<compile_context>
chip_gen: v6e
topology: v6e:2x2x1
jax: 0.10.0
libtpu: 0.0.40
codegen_flags: <defaults>
</compile_context>

<pallas_src>
import math

import jax
import jax.numpy as jnp
from jax.experimental import pallas as pl
from jax.experimental.pallas import tpu as pltpu


def _svd_head_kernel(src_emb_t_ref, tgt_emb_ref, src_ref, tgt_aug_ref, aws_ref,
                     out_ref):
    """One grid step: TB batch elements, all slabs resident in VMEM.

    Block shapes:
      src_emb_t (TB, N, D) bf16  (pre-scaled by 1/sqrt(d_k) in the wrapper)
      tgt_emb   (TB, D, M) bf16
      src       (TB, 3, N) f32
      tgt_aug   (TB, M, 4) bf16|f32   last column is all-ones (denominator trick)
      aws       (TB, 1, N) f32
      out       (TB, 4, 4) f32   rows 0:3, cols 0:3 = H ; row 3, cols 0:3 = corr_mean
    """
    n_pts = src_ref.shape[2]
    corr_dtype = tgt_aug_ref.dtype

    # scores = (src_emb^T / sqrt(d_k)) @ tgt_emb -> (TB, N, M), f32 accumulation.
    scores = jnp.einsum('bnd,bdm->bnm', src_emb_t_ref[...], tgt_emb_ref[...],
                        preferred_element_type=jnp.float32)

    # Softmax over M with deferred normalization; exp output produced directly
    # in the correspondence-matmul dtype (bf16 on v6e/v7x, f32 on v5e).
    m = jnp.max(scores, axis=-1, keepdims=True)           # (TB, N, 1)
    e = jnp.exp(scores - m).astype(corr_dtype)            # (TB, N, M)

    # One canonical matmul gives un-normalized correspondence AND denominator:
    #   corr_aug = e @ [tgt^T | 1] -> (TB, N, 4), f32 accumulation.
    corr_aug = jnp.einsum('bnm,bmj->bnj', e, tgt_aug_ref[...],
                          preferred_element_type=jnp.float32)
    denom = corr_aug[:, :, 3:4]                            # (TB, N, 1)
    inv_denom = pl.reciprocal(denom)                       # exact, O(TB*N)
    src_corr = corr_aug[:, :, 0:3] * inv_denom             # (TB, N, 3) = src_corr^T

    inv_n = 1.0 / n_pts
    corr_mean = jnp.sum(src_corr, axis=1, keepdims=True) * inv_n    # (TB, 1, 3)
    corr_centered = src_corr - corr_mean                            # (TB, N, 3)

    src = src_ref[...]                                              # (TB, 3, N)
    src_mean = jnp.sum(src, axis=2, keepdims=True) * inv_n          # (TB, 3, 1)
    src_centered = src - src_mean
    weighted = aws_ref[...] * src_centered                          # (TB, 3, N)

    # H = (aws * src_centered) @ src_corr_centered^T -> (TB, 3, 3); canonical
    # contraction over N, no transpose of either operand.
    h = jnp.einsum('bin,bnj->bij', weighted, corr_centered,
                   preferred_element_type=jnp.float32)

    out_ref[...] = jnp.zeros(out_ref.shape, out_ref.dtype)
    out_ref[:, 0:3, 0:3] = h
    out_ref[:, 3:4, 0:3] = corr_mean


def _tpu_vmem_target_and_corr_dtype():
    """Per-generation scoped-VMEM budget and correspondence-matmul dtype."""
    mib = 1024 * 1024
    kind = ""
    try:
        kind = jax.devices()[0].device_kind.lower()
    except Exception:
        pass
    vmem_phys = None
    try:
        vmem_phys = int(pltpu.get_tpu_info().vmem_capacity_bytes)
    except Exception:
        vmem_phys = None
    if vmem_phys is None:
        vmem_phys = 64 * mib if "7" in kind else 128 * mib
    if "7" in kind:                      # v7x: 64 MiB per TensorCore
        vmem_phys = min(vmem_phys, 64 * mib)
    if vmem_phys <= 64 * mib:
        vmem_target = 52 * mib           # leave headroom for Mosaic scratch (v7x)
    else:
        vmem_target = 100 * mib          # v5e / v6e 128-MiB parts
    # v5 and older: no bf16 VPU/EUP -> keep the probability slab in f32.
    old_gen = any(t in kind for t in ("v2", "v3", "v4", "v5"))
    corr_dtype = jnp.float32 if old_gen else jnp.bfloat16
    return vmem_target, corr_dtype


def svd_head_pallas(src_embedding, tgt_embedding, src, tgt, aws=None):
    """Pallas implementation of SVDHead.forward. Returns (R, t)."""
    B, D, N = src_embedding.shape
    M = tgt_embedding.shape[2]
    d_k = D                              # original (un-padded) emb dim

    vmem_target, corr_dtype = _tpu_vmem_target_and_corr_dtype()

    # Layout plumbing in the wrapper: transpose + 1/sqrt(d_k) scale + bf16 cast
    # of src_embedding fuse into the single HBM pass XLA already performs.
    inv_sqrt_dk = 1.0 / math.sqrt(d_k)
    src_emb_t = (jnp.swapaxes(src_embedding, 1, 2) * inv_sqrt_dk).astype(jnp.bfloat16)
    tgt_emb = tgt_embedding.astype(jnp.bfloat16)                    # (B, D, M)
    src_f = src.astype(jnp.float32)                                 # (B, 3, N)
    tgt_t = jnp.swapaxes(tgt, 1, 2).astype(jnp.float32)             # (B, M, 3)
    if aws is None:
        aws_b = jnp.ones((B, 1, N), dtype=jnp.float32)
    else:
        aws_b = aws.reshape(B, 1, N).astype(jnp.float32)

    # --- TB from the per-generation VMEM budget (intermediates counted once,
    # pipeline inputs/outputs double-buffered). ---
    e_bytes = 2 if corr_dtype == jnp.bfloat16 else 4
    in_bytes = (N * D * 2 + D * M * 2          # bf16 embeddings
                + 3 * N * 4                    # src (f32)
                + M * 4 * e_bytes              # tgt_aug
                + N * 4)                       # aws
    out_bytes = 4 * 4 * 4
    interm_bytes = (N * M * 4                  # scores (f32)
                    + N * M * e_bytes          # e
                    + 3 * N * 4 * 4            # corr_aug / src_corr / centered
                    + 8 * N * 4 + 64)          # src_centered, means, denom, H
    per_elem = 2 * (in_bytes + out_bytes) + interm_bytes

    tb = max(1, min(64, B, (vmem_target * 4 // 5) // per_elem))
    if B >= 2:                                 # >= 2 grid steps: both v7x TCs busy
        tb = min(tb, -(-B // 2))
    tb = max(1, tb)
    b_pad = -(-B // tb) * tb

    if b_pad != B:
        pad = ((0, b_pad - B), (0, 0), (0, 0))
        src_emb_t = jnp.pad(src_emb_t, pad)
        tgt_emb = jnp.pad(tgt_emb, pad)
        src_f = jnp.pad(src_f, pad)
        tgt_t = jnp.pad(tgt_t, pad)
        aws_b = jnp.pad(aws_b, pad, constant_values=1.0)

    # Ones column appended AFTER padding so padded rows keep denom = M (finite
    # garbage; padded elements are sliced off before the SVD).
    ones_col = jnp.ones((b_pad, M, 1), dtype=jnp.float32)
    tgt_aug = jnp.concatenate([tgt_t, ones_col], axis=-1).astype(corr_dtype)

    vmem_limit = int(min(vmem_target,
                         max(tb * per_elem * 5 // 4 + (2 << 20), 32 << 20)))

    kernel = pl.pallas_call(
        _svd_head_kernel,
        out_shape=jax.ShapeDtypeStruct((b_pad, 4, 4), jnp.float32),
        grid_spec=pltpu.PrefetchScalarGridSpec(
            num_scalar_prefetch=0,
            grid=(b_pad // tb,),
            in_specs=[
                pl.BlockSpec((tb, N, D), lambda b: (b, 0, 0)),
                pl.BlockSpec((tb, D, M), lambda b: (b, 0, 0)),
                pl.BlockSpec((tb, 3, N), lambda b: (b, 0, 0)),
                pl.BlockSpec((tb, M, 4), lambda b: (b, 0, 0)),
                pl.BlockSpec((tb, 1, N), lambda b: (b, 0, 0)),
            ],
            out_specs=pl.BlockSpec((tb, 4, 4), lambda b: (b, 0, 0)),
        ),
        compiler_params=pltpu.CompilerParams(
            dimension_semantics=("parallel",),
            vmem_limit_bytes=vmem_limit),
    )

    packed = kernel(src_emb_t, tgt_emb, src_f, tgt_aug, aws_b)[:B]   # (B, 4, 4)
    H = packed[:, 0:3, 0:3]                                          # (B, 3, 3)
    corr_mean = packed[:, 3, 0:3][:, :, None]                        # (B, 3, 1)
    src_mean = jnp.mean(src.astype(jnp.float32), axis=2, keepdims=True)

    # --- glue: 3x3 SVD + det-based reflection fix (no Pallas SVD primitive).
    # torch.linalg.svd returns (U, S, Vh); the module computes r = Vh @ U^T and,
    # if det(r) < 0, r = (Vh @ reflect) @ U^T with reflect = diag(1, 1, -1).
    # (the r_pert perturbation in the reference is dead code: set to 0.0)
    u, _, vh = jnp.linalg.svd(H)
    ut = jnp.swapaxes(u, -1, -2)
    r = jnp.matmul(vh, ut)
    det = jnp.linalg.det(r)
    reflect = jnp.diag(jnp.array([1.0, 1.0, -1.0], dtype=jnp.float32))
    r_fixed = jnp.matmul(jnp.matmul(vh, reflect), ut)
    R = jnp.where(det[:, None, None] < 0.0, r_fixed, r)

    t = jnp.matmul(-R, src_mean) + corr_mean                         # (B, 3, 1)
    return R, t.reshape(B, 3)


if __name__ == "__main__":
    key = jax.random.PRNGKey(0)
    B, D, N, M = 2, 16, 16, 16   # emb_dims = 16 as in the module __init__
    k1, k2, k3, k4, k5 = jax.random.split(key, 5)
    src_embedding = jax.random.normal(k1, (B, D, N), dtype=jnp.float32)
    tgt_embedding = jax.random.normal(k2, (B, D, M), dtype=jnp.float32)
    src = jax.random.normal(k3, (B, 3, N), dtype=jnp.float32)
    tgt = jax.random.normal(k4, (B, 3, M), dtype=jnp.float32)
    aws = jax.nn.sigmoid(jax.random.normal(k5, (B, N), dtype=jnp.float32))

    R, t = svd_head_pallas(src_embedding, tgt_embedding, src, tgt, aws)
    jax.block_until_ready((R, t))
    assert R.shape == (B, 3, 3) and t.shape == (B, 3)
    assert bool(jnp.isfinite(R).all()) and bool(jnp.isfinite(t).all())
    # R must be a proper rotation (orthogonal, det = +1) regardless of the
    # low-precision paths feeding H.
    eye = jnp.eye(3, dtype=jnp.float32)
    rtr = jnp.einsum('bij,bkj->bik', R, R)
    assert bool(jnp.allclose(rtr, eye[None], atol=1e-3))
    assert bool(jnp.allclose(jnp.linalg.det(R), 1.0, atol=1e-3))
    print("KERNEL_OK")
</pallas_src>

<mosaic_0001>
module attributes {stable_mosaic.version = 11 : i64} {
  func.func @_svd_head_kernel(%arg0: i32, %arg1: memref<1x16x16xbf16, #tpu.memory_space<vmem>>, %arg2: memref<1x16x16xbf16, #tpu.memory_space<vmem>>, %arg3: memref<1x3x16xf32, #tpu.memory_space<vmem>>, %arg4: memref<1x16x4xbf16, #tpu.memory_space<vmem>>, %arg5: memref<1x1x16xf32, #tpu.memory_space<vmem>>, %arg6: memref<1x4x4xf32, #tpu.memory_space<vmem>>) attributes {dimension_semantics = [#tpu.dimension_semantics<parallel>], iteration_bounds = array<i64: 2>, scalar_prefetch = 0 : i64, scratch_operands = 0 : i64, tpu.core_type = #tpu.core_type<tc>, window_params = [{transform_indices = @transform_0, window_bounds = array<i64: 1, 16, 16>}, {transform_indices = @transform_1, window_bounds = array<i64: 1, 16, 16>}, {transform_indices = @transform_2, window_bounds = array<i64: 1, 3, 16>}, {transform_indices = @transform_3, window_bounds = array<i64: 1, 16, 4>}, {transform_indices = @transform_4, window_bounds = array<i64: 1, 1, 16>}, {transform_indices = @transform_5, window_bounds = array<i64: 1, 4, 4>}]} {
    %c0 = arith.constant 0 : index
    %c0_0 = arith.constant 0 : index
    %c0_1 = arith.constant 0 : index
    %0 = vector.load %arg1[%c0, %c0_0, %c0_1] : memref<1x16x16xbf16, #tpu.memory_space<vmem>>, vector<1x16x16xbf16>
    %c0_2 = arith.constant 0 : index
    %c0_3 = arith.constant 0 : index
    %c0_4 = arith.constant 0 : index
    %1 = vector.load %arg2[%c0_2, %c0_3, %c0_4] : memref<1x16x16xbf16, #tpu.memory_space<vmem>>, vector<1x16x16xbf16>
    "tpu.trace_start"() <{level = 10 : i32, message = "bnd,bdm->bnm"}> : () -> ()
    %cst = arith.constant dense<0.000000e+00> : vector<1x16x16xf32>
    %2 = tpu.matmul %0, %1, %cst {dimension_numbers = #tpu.dot_dimension_numbers<[2], [1], [1], [2], [0, 0, 0, 1, 1, 2], [0], [0]>} : vector<1x16x16xbf16>, vector<1x16x16xbf16>, vector<1x16x16xf32> -> vector<1x16x16xf32>
    "tpu.trace_stop"() : () -> ()
    %cst_5 = arith.constant dense<0xFF800000> : vector<1x16xf32>
    %3 = vector.multi_reduction <maximumf>, %2, %cst_5 [2] : vector<1x16x16xf32> to vector<1x16xf32>
    %4 = vector.shape_cast %3 : vector<1x16xf32> to vector<1x16x1xf32>
    %5 = vector.broadcast %4 : vector<1x16x1xf32> to vector<1x16x16xf32>
    %6 = arith.subf %2, %5 : vector<1x16x16xf32>
    %7 = math.exp %6 : vector<1x16x16xf32>
    %8 = arith.truncf %7 : vector<1x16x16xf32> to vector<1x16x16xbf16>
    %c0_6 = arith.constant 0 : index
    %c0_7 = arith.constant 0 : index
    %c0_8 = arith.constant 0 : index
    %9 = vector.load %arg4[%c0_6, %c0_7, %c0_8] : memref<1x16x4xbf16, #tpu.memory_space<vmem>>, vector<1x16x4xbf16>
    "tpu.trace_start"() <{level = 10 : i32, message = "bnm,bmj->bnj"}> : () -> ()
    %cst_9 = arith.constant dense<0.000000e+00> : vector<1x16x4xf32>
    %10 = tpu.matmul %8, %9, %cst_9 {dimension_numbers = #tpu.dot_dimension_numbers<[2], [1], [1], [2], [0, 0, 0, 1, 1, 2], [0], [0]>} : vector<1x16x16xbf16>, vector<1x16x4xbf16>, vector<1x16x4xf32> -> vector<1x16x4xf32>
    "tpu.trace_stop"() : () -> ()
    %11 = vector.extract_strided_slice %10 {offsets = [0, 0, 3], sizes = [1, 16, 1], strides = [1, 1, 1]} : vector<1x16x4xf32> to vector<1x16x1xf32>
    %12 = tpu.reciprocal %11 : vector<1x16x1xf32> -> vector<1x16x1xf32>
    %13 = vector.extract_strided_slice %10 {offsets = [0, 0, 0], sizes = [1, 16, 3], strides = [1, 1, 1]} : vector<1x16x4xf32> to vector<1x16x3xf32>
    %14 = vector.broadcast %12 : vector<1x16x1xf32> to vector<1x16x3xf32>
    %15 = arith.mulf %13, %14 : vector<1x16x3xf32>
    %cst_10 = arith.constant dense<0.000000e+00> : vector<1x3xf32>
    %16 = vector.multi_reduction <add>, %15, %cst_10 [1] : vector<1x16x3xf32> to vector<1x3xf32>
    %17 = vector.shape_cast %16 : vector<1x3xf32> to vector<1x1x3xf32>
    %cst_11 = arith.constant 6.250000e-02 : f32
    %18 = vector.broadcast %cst_11 : f32 to vector<1x1x3xf32>
    %19 = arith.mulf %17, %18 : vector<1x1x3xf32>
    %20 = vector.broadcast %19 : vector<1x1x3xf32> to vector<1x16x3xf32>
    %21 = arith.subf %15, %20 : vector<1x16x3xf32>
    %c0_12 = arith.constant 0 : index
    %c0_13 = arith.constant 0 : index
    %c0_14 = arith.constant 0 : index
    %22 = vector.load %arg3[%c0_12, %c0_13, %c0_14] : memref<1x3x16xf32, #tpu.memory_space<vmem>>, vector<1x3x16xf32>
    %cst_15 = arith.constant dense<0.000000e+00> : vector<1x3xf32>
    %23 = vector.multi_reduction <add>, %22, %cst_15 [2] : vector<1x3x16xf32> to vector<1x3xf32>
    %24 = vector.shape_cast %23 : vector<1x3xf32> to vector<1x3x1xf32>
    %cst_16 = arith.constant 6.250000e-02 : f32
    %25 = vector.broadcast %cst_16 : f32 to vector<1x3x1xf32>
    %26 = arith.mulf %24, %25 : vector<1x3x1xf32>
    %27 = vector.broadcast %26 : vector<1x3x1xf32> to vector<1x3x16xf32>
    %28 = arith.subf %22, %27 : vector<1x3x16xf32>
    %c0_17 = arith.constant 0 : index
    %c0_18 = arith.constant 0 : index
    %c0_19 = arith.constant 0 : index
    %29 = vector.load %arg5[%c0_17, %c0_18, %c0_19] : memref<1x1x16xf32, #tpu.memory_space<vmem>>, vector<1x1x16xf32>
    %30 = vector.broadcast %29 : vector<1x1x16xf32> to vector<1x3x16xf32>
    %31 = arith.mulf %30, %28 : vector<1x3x16xf32>
    "tpu.trace_start"() <{level = 10 : i32, message = "bin,bnj->bij"}> : () -> ()
    %cst_20 = arith.constant dense<0.000000e+00> : vector<1x3x3xf32>
    %32 = tpu.matmul %31, %21, %cst_20 {dimension_numbers = #tpu.dot_dimension_numbers<[2], [1], [1], [2], [0, 0, 0, 1, 1, 2], [0], [0]>} : vector<1x3x16xf32>, vector<1x16x3xf32>, vector<1x3x3xf32> -> vector<1x3x3xf32>
    %cst_21 = arith.constant 0.000000e+00 : f32
    "tpu.trace_stop"() : () -> ()
    %33 = vector.broadcast %cst_21 : f32 to vector<1x4x4xf32>
    %c0_22 = arith.constant 0 : index
    %c0_23 = arith.constant 0 : index
    %c0_24 = arith.constant 0 : index
    %34 = vector.load %arg6[%c0_22, %c0_23, %c0_24] : memref<1x4x4xf32, #tpu.memory_space<vmem>>, vector<1x4x4xf32>
    tpu.vector_store %arg6[%c0_22, %c0_23, %c0_24], %33 {strides = array<i32>} : memref<1x4x4xf32, #tpu.memory_space<vmem>>, vector<1x4x4xf32>,
    %c0_25 = arith.constant 0 : index
    %c0_26 = arith.constant 0 : index
    %c0_27 = arith.constant 0 : index
    %35 = vector.load %arg6[%c0_25, %c0_26, %c0_27] : memref<1x4x4xf32, #tpu.memory_space<vmem>>, vector<1x3x3xf32>
    tpu.vector_store %arg6[%c0_25, %c0_26, %c0_27], %32 {strides = array<i32>} : memref<1x4x4xf32, #tpu.memory_space<vmem>>, vector<1x3x3xf32>,
    %c0_28 = arith.constant 0 : index
    %c3 = arith.constant 3 : index
    %c0_29 = arith.constant 0 : index
    %36 = vector.load %arg6[%c0_28, %c3, %c0_29] : memref<1x4x4xf32, #tpu.memory_space<vmem>>, vector<1x1x3xf32>
    tpu.vector_store %arg6[%c0_28, %c3, %c0_29], %19 {strides = array<i32>} : memref<1x4x4xf32, #tpu.memory_space<vmem>>, vector<1x1x3xf32>,
    return
  }
  func.func @transform_0(%arg0: i32) -> (i32, i32, i32) {
    %c0_i32 = arith.constant 0 : i32
    %c0_i32_0 = arith.constant 0 : i32
    %c0_i32_1 = arith.constant 0 : i32
    return %arg0, %c0_i32, %c0_i32_0 : i32, i32, i32
  }
  func.func @transform_1(%arg0: i32) -> (i32, i32, i32) {
    %c0_i32 = arith.constant 0 : i32
    %c0_i32_0 = arith.constant 0 : i32
    %c0_i32_1 = arith.constant 0 : i32
    return %arg0, %c0_i32, %c0_i32_0 : i32, i32, i32
  }
  func.func @transform_2(%arg0: i32) -> (i32, i32, i32) {
    %c0_i32 = arith.constant 0 : i32
    %c0_i32_0 = arith.constant 0 : i32
    %c0_i32_1 = arith.constant 0 : i32
    return %arg0, %c0_i32, %c0_i32_0 : i32, i32, i32
  }
  func.func @transform_3(%arg0: i32) -> (i32, i32, i32) {
    %c0_i32 = arith.constant 0 : i32
    %c0_i32_0 = arith.constant 0 : i32
    %c0_i32_1 = arith.constant 0 : i32
    return %arg0, %c0_i32, %c0_i32_0 : i32, i32, i32
  }
  func.func @transform_4(%arg0: i32) -> (i32, i32, i32) {
    %c0_i32 = arith.constant 0 : i32
    %c0_i32_0 = arith.constant 0 : i32
    %c0_i32_1 = arith.constant 0 : i32
    return %arg0, %c0_i32, %c0_i32_0 : i32, i32, i32
  }
  func.func @transform_5(%arg0: i32) -> (i32, i32, i32) {
    %c0_i32 = arith.constant 0 : i32
    %c0_i32_0 = arith.constant 0 : i32
    %c0_i32_1 = arith.constant 0 : i32
    return %arg0, %c0_i32, %c0_i32_0 : i32, i32, i32
  }
}

</mosaic_0001>

<llo_original>
// kernel: tpu_custom_call.1
$region0: #{tpu_custom_call.1}
  #allocation0 [shape = 'u32[]', space=smem, size = 0x4, offset = 0x4, fixed_abs, tag = 'smem constant byte address 0x4 - core index']
  #allocation1 [shape = 'u32[144,128]{1,0:T(1,128)}', space=vmem, size = 0x12000, scoped, tag = 'internal scratch']
  %s0 = inlined_call_operand.vmem [shape: bf16[2,16,16], index: 0, kind: input, shape index: {}]
  %s1 = inlined_call_operand.vmem [shape: bf16[2,16,16], index: 1, kind: input, shape index: {}]
  %s2 = inlined_call_operand.vmem [shape: f32[2,3,16], index: 2, kind: input, shape index: {}]
  %s3 = inlined_call_operand.vmem [shape: bf16[2,16,4], index: 3, kind: input, shape index: {}]
  %s4 = inlined_call_operand.vmem [shape: f32[2,1,16], index: 4, kind: input, shape index: {}]
  %s5 = inlined_call_operand.hbm [shape: f32[2,4,4], index: 5, kind: output, shape index: {}]
  %s6 = sld [smem:[#allocation0]]
  $region53: #{tpu_custom_call.1} parent=0
    _
  %s8 = ssub.s32 1, %s6
  %s9 = scalar_select 0, %s8, %s6
  $region1: #{tpu_custom_call.1} parent=0
    #allocation2 [shape = 'u8[4096]{0}', space=vmem, size = 0x1000, scoped, tag = 'output window, operand 0']
    #allocation3 [shape = 's32[2]{0}', space=sflag, size = 0x8, scoped, tag = 'scoped memory for tpu_custom_call.1']
    %10 = vsyncpa [#allocation3], 0
    %s11 = scalar_lea.sflag [#allocation3], 1
    %12 = vsyncpa %s11, 0
    loop: start=0, step=1, limit=4
    $region2: #{tpu_custom_call.1} parent=1 // loop_pre_header
      _
    $region3: #{tpu_custom_call.1} parent=1 // loop_header
      %s14 = sphi 0, %s18
      %p15 = scmp.ge.s32.totalorder %s14, 4
      %s24 = sphi 0, %s26
      %s27 = sphi 0, %s24
      %s28 = sphi 0, %s27
      %s44 = sphi 0, %s28
      %s50 = sphi 0, %s52
      %s53 = sphi 0, %s50
      %s54 = sphi 0, %s53
      %s70 = sphi 0, %s54
      %s76 = sphi 0, %s78
      %s79 = sphi 0, %s76
      %s80 = sphi 0, %s79
      %s96 = sphi 0, %s80
      %s102 = sphi 0, %s104
      %s105 = sphi 0, %s102
      %s106 = sphi 0, %s105
      %s122 = sphi 0, %s106
      %s128 = sphi 0, %s130
      %s131 = sphi 0, %s128
      %s132 = sphi 0, %s131
      %s148 = sphi 0, %s132
      %s154 = sphi 0, %s156
      %s157 = sphi 0, %s154
      %s158 = sphi 0, %s157
      %s174 = sphi 0, %s158
    $region4: #{tpu_custom_call.1} parent=1 // loop_header_branch
      %17 = sbr.rel (%p15) target = $region8
    $region5: #{tpu_custom_call.1} parent=1 // loop_body
      %s19 = ssub.s32 %s14, 1
      %s20 = ssub.s32 %s14, 2
      %s21 = sadd.s32 %s14, 1
      %s22 = ssub.s32 %s14, %s21
      %p23 = scmp.eq.s32.totalorder %s22, 0
      %s25 = sadd.s32 %s24, 1
      %s26 = scalar_select %p23, %s24, %s25
      %p29 = pneg %p23
      %p30 = scmp.eq.s32.totalorder %s14, 1
      %p31 = por %p29, %p30
      %p32 = scmp.ne.s32.totalorder %s24, %s27
      %p33 = scmp.eq.s32.totalorder %s14, 0
      %p34 = por %p32, %p33
      %p35 = scmp.ne.s32.totalorder %s24, %s27
      %p36 = scmp.eq.s32.totalorder %s19, 1
      %p37 = por %p35, %p36
      %p38 = scmp.ne.s32.totalorder %s27, %s28
      %p39 = scmp.eq.s32.totalorder %s19, 0
      %p40 = por %p38, %p39
      %p41 = scmp.ne.s32.totalorder %s27, %s28
      %p42 = scmp.eq.s32.totalorder %s20, 1
      %p43 = por %p41, %p42
      %p45 = scmp.ne.s32.totalorder %s28, %s44
      %p46 = scmp.eq.s32.totalorder %s20, 0
      %p47 = por %p45, %p46
      %s48 = ssub.s32 %s14, %s21
      %p49 = scmp.eq.s32.totalorder %s48, 0
      %s51 = sadd.s32 %s50, 1
      %s52 = scalar_select %p49, %s50, %s51
      %p55 = pneg %p49
      %p56 = scmp.eq.s32.totalorder %s14, 1
      %p57 = por %p55, %p56
      %p58 = scmp.ne.s32.totalorder %s50, %s53
      %p59 = scmp.eq.s32.totalorder %s14, 0
      %p60 = por %p58, %p59
      %p61 = scmp.ne.s32.totalorder %s50, %s53
      %p62 = scmp.eq.s32.totalorder %s19, 1
      %p63 = por %p61, %p62
      %p64 = scmp.ne.s32.totalorder %s53, %s54
      %p65 = scmp.eq.s32.totalorder %s19, 0
      %p66 = por %p64, %p65
      %p67 = scmp.ne.s32.totalorder %s53, %s54
      %p68 = scmp.eq.s32.totalorder %s20, 1
      %p69 = por %p67, %p68
      %p71 = scmp.ne.s32.totalorder %s54, %s70
      %p72 = scmp.eq.s32.totalorder %s20, 0
      %p73 = por %p71, %p72
      %s74 = ssub.s32 %s14, %s21
      %p75 = scmp.eq.s32.totalorder %s74, 0
      %s77 = sadd.s32 %s76, 1
      %s78 = scalar_select %p75, %s76, %s77
      %p81 = pneg %p75
      %p82 = scmp.eq.s32.totalorder %s14, 1
      %p83 = por %p81, %p82
      %p84 = scmp.ne.s32.totalorder %s76, %s79
      %p85 = scmp.eq.s32.totalorder %s14, 0
      %p86 = por %p84, %p85
      %p87 = scmp.ne.s32.totalorder %s76, %s79
      %p88 = scmp.eq.s32.totalorder %s19, 1
      %p89 = por %p87, %p88
      %p90 = scmp.ne.s32.totalorder %s79, %s80
      %p91 = scmp.eq.s32.totalorder %s19, 0
      %p92 = por %p90, %p91
      %p93 = scmp.ne.s32.totalorder %s79, %s80
      %p94 = scmp.eq.s32.totalorder %s20, 1
      %p95 = por %p93, %p94
      %p97 = scmp.ne.s32.totalorder %s80, %s96
      %p98 = scmp.eq.s32.totalorder %s20, 0
      %p99 = por %p97, %p98
      %s100 = ssub.s32 %s14, %s21
      %p101 = scmp.eq.s32.totalorder %s100, 0
      %s103 = sadd.s32 %s102, 1
      %s104 = scalar_select %p101, %s102, %s103
      %p107 = pneg %p101
      %p108 = scmp.eq.s32.totalorder %s14, 1
      %p109 = por %p107, %p108
      %p110 = scmp.ne.s32.totalorder %s102, %s105
      %p111 = scmp.eq.s32.totalorder %s14, 0
      %p112 = por %p110, %p111
      %p113 = scmp.ne.s32.totalorder %s102, %s105
      %p114 = scmp.eq.s32.totalorder %s19, 1
      %p115 = por %p113, %p114
      %p116 = scmp.ne.s32.totalorder %s105, %s106
      %p117 = scmp.eq.s32.totalorder %s19, 0
      %p118 = por %p116, %p117
      %p119 = scmp.ne.s32.totalorder %s105, %s106
      %p120 = scmp.eq.s32.totalorder %s20, 1
      %p121 = por %p119, %p120
      %p123 = scmp.ne.s32.totalorder %s106, %s122
      %p124 = scmp.eq.s32.totalorder %s20, 0
      %p125 = por %p123, %p124
      %s126 = ssub.s32 %s14, %s21
      %p127 = scmp.eq.s32.totalorder %s126, 0
      %s129 = sadd.s32 %s128, 1
      %s130 = scalar_select %p127, %s128, %s129
      %p133 = pneg %p127
      %p134 = scmp.eq.s32.totalorder %s14, 1
      %p135 = por %p133, %p134
      %p136 = scmp.ne.s32.totalorder %s128, %s131
      %p137 = scmp.eq.s32.totalorder %s14, 0
      %p138 = por %p136, %p137
      %p139 = scmp.ne.s32.totalorder %s128, %s131
      %p140 = scmp.eq.s32.totalorder %s19, 1
      %p141 = por %p139, %p140
      %p142 = scmp.ne.s32.totalorder %s131, %s132
      %p143 = scmp.eq.s32.totalorder %s19, 0
      %p144 = por %p142, %p143
      %p145 = scmp.ne.s32.totalorder %s131, %s132
      %p146 = scmp.eq.s32.totalorder %s20, 1
      %p147 = por %p145, %p146
      %p149 = scmp.ne.s32.totalorder %s132, %s148
      %p150 = scmp.eq.s32.totalorder %s20, 0
      %p151 = por %p149, %p150
      %s152 = ssub.s32 %s14, %s21
      %p153 = scmp.eq.s32.totalorder %s152, 0
      %s155 = sadd.s32 %s154, 1
      %s156 = scalar_select %p153, %s154, %s155
      %p159 = pneg %p153
      %p160 = scmp.eq.s32.totalorder %s14, 1
      %p161 = por %p159, %p160
      %p162 = scmp.ne.s32.totalorder %s154, %s157
      %p163 = scmp.eq.s32.totalorder %s14, 0
      %p164 = por %p162, %p163
      %p165 = scmp.ne.s32.totalorder %s154, %s157
      %p166 = scmp.eq.s32.totalorder %s19, 1
      %p167 = por %p165, %p166
      %p168 = scmp.ne.s32.totalorder %s157, %s158
      %p169 = scmp.eq.s32.totalorder %s19, 0
      %p170 = por %p168, %p169
      %p171 = scmp.ne.s32.totalorder %s157, %s158
      %p172 = scmp.eq.s32.totalorder %s20, 1
      %p173 = por %p171, %p172
      %p175 = scmp.ne.s32.totalorder %s158, %s174
      %p176 = scmp.eq.s32.totalorder %s20, 0
      %p177 = por %p175, %p176
      %p178 = scmp.le.s32.totalorder 1, %s14
      %p179 = scmp.lt.s32.totalorder %s14, 3
      %p180 = pnand %p178, %p179
      %p181 = pneg %p180
      // Predicated region
      $region9: #{tpu_custom_call.1} parent=5 // pred_check
        _
      $region10: #{tpu_custom_call.1} parent=5 // pred_check_branch
        %183 = sbr.rel (%p180) target = $region12
      $region11: #{tpu_custom_call.1} parent=5 // pred_region
        %s184 = ssub.s32 %s14, 1
      $region12: #{tpu_custom_call.1} parent=5 // pred_fallthru
        _
      %p185 = scmp.lt.s32.totalorder %s14, 2
      // Predicated region
      $region13: #{tpu_custom_call.1} parent=5 // pred_check
        %p186 = pneg %p185
      $region14: #{tpu_custom_call.1} parent=5 // pred_check_branch
        %188 = sbr.rel (%p186) target = $region16
      $region15: #{tpu_custom_call.1} parent=5 // pred_region
        // Predicated region
        $region17: #{tpu_custom_call.1} parent=15 // pred_check
          %p189 = pneg %p34
        $region18: #{tpu_custom_call.1} parent=15 // pred_check_branch
          %191 = sbr.rel (%p189) target = $region20
        $region19: #{tpu_custom_call.1} parent=15 // pred_region
          %p192 = scmp.lt.s32.totalorder %s14, 1
          %s193 = scalar_select %p192, %s14, 1
          %s194 = smul.addr %s193, 2
          %s195 = smul.addr %s194, 4
          %s196 = scalar_lea.vmem %s0, %s195
        $region20: #{tpu_custom_call.1} parent=15 // pred_fallthru
          _
        // Predicated region
        $region21: #{tpu_custom_call.1} parent=15 // pred_check
          %p197 = pneg %p60
        $region22: #{tpu_custom_call.1} parent=15 // pred_check_branch
          %199 = sbr.rel (%p197) target = $region24
        $region23: #{tpu_custom_call.1} parent=15 // pred_region
          %p200 = scmp.lt.s32.totalorder %s14, 1
          %s201 = scalar_select %p200, %s14, 1
          %s202 = smul.addr %s201, 2
          %s203 = smul.addr %s202, 4
          %s204 = scalar_lea.vmem %s1, %s203
        $region24: #{tpu_custom_call.1} parent=15 // pred_fallthru
          _
        // Predicated region
        $region25: #{tpu_custom_call.1} parent=15 // pred_check
          %p205 = pneg %p86
        $region26: #{tpu_custom_call.1} parent=15 // pred_check_branch
          %207 = sbr.rel (%p205) target = $region28
        $region27: #{tpu_custom_call.1} parent=15 // pred_region
          %p208 = scmp.lt.s32.totalorder %s14, 1
          %s209 = scalar_select %p208, %s14, 1
          %s210 = smul.addr %s209, 4
          %s211 = scalar_lea.vmem %s2, %s210
        $region28: #{tpu_custom_call.1} parent=15 // pred_fallthru
          _
        // Predicated region
        $region29: #{tpu_custom_call.1} parent=15 // pred_check
          %p212 = pneg %p112
        $region30: #{tpu_custom_call.1} parent=15 // pred_check_branch
          %214 = sbr.rel (%p212) target = $region32
        $region31: #{tpu_custom_call.1} parent=15 // pred_region
          %p215 = scmp.lt.s32.totalorder %s14, 1
          %s216 = scalar_select %p215, %s14, 1
          %s217 = smul.addr %s216, 2
          %s218 = smul.addr %s217, 4
          %s219 = scalar_lea.vmem %s3, %s218
        $region32: #{tpu_custom_call.1} parent=15 // pred_fallthru
          _
        // Predicated region
        $region33: #{tpu_custom_call.1} parent=15 // pred_check
          %p220 = pneg %p138
        $region34: #{tpu_custom_call.1} parent=15 // pred_check_branch
          %222 = sbr.rel (%p220) target = $region36
        $region35: #{tpu_custom_call.1} parent=15 // pred_region
          %p223 = scmp.lt.s32.totalorder %s14, 1
          %s224 = scalar_select %p223, %s14, 1
          %s225 = scalar_lea.vmem %s4, %s224
        $region36: #{tpu_custom_call.1} parent=15 // pred_fallthru
          _
      $region16: #{tpu_custom_call.1} parent=5 // pred_fallthru
        _
      %p226 = scmp.le.s32.totalorder 1, %s14
      %p227 = scmp.lt.s32.totalorder %s14, 3
      %p228 = pnand %p226, %p227
      %p229 = pneg %p228
      // Predicated region
      $region37: #{tpu_custom_call.1} parent=5 // pred_check
        _
      $region38: #{tpu_custom_call.1} parent=5 // pred_check_branch
        %231 = sbr.rel (%p228) target = $region40
      $region39: #{tpu_custom_call.1} parent=5 // pred_region
        %s232 = ssub.s32 %s14, 1
        %p233 = scmp.lt.s32.totalorder %s19, 1
        %s234 = scalar_select %p233, %s19, 1
        %s235 = smul.addr %s234, 2
        %s236 = smul.addr %s235, 4
        %s237 = scalar_lea.vmem %s0, %s236
        %p238 = pneg %p40
        %p239 = pneg %p37
        %p240 = scmp.lt.s32.totalorder %s19, 1
        %s241 = scalar_select %p240, %s19, 1
        %s242 = smul.addr %s241, 2
        %s243 = smul.addr %s242, 4
        %s244 = scalar_lea.vmem %s1, %s243
        %p245 = pneg %p66
        %p246 = pneg %p63
        %p247 = scmp.lt.s32.totalorder %s19, 1
        %s248 = scalar_select %p247, %s19, 1
        %s249 = smul.addr %s248, 4
        %s250 = scalar_lea.vmem %s2, %s249
        %p251 = pneg %p92
        %p252 = pneg %p89
        %p253 = scmp.lt.s32.totalorder %s19, 1
        %s254 = scalar_select %p253, %s19, 1
        %s255 = smul.addr %s254, 2
        %s256 = smul.addr %s255, 4
        %s257 = scalar_lea.vmem %s3, %s256
        %p258 = pneg %p118
        %p259 = pneg %p115
        %p260 = scmp.lt.s32.totalorder %s19, 1
        %s261 = scalar_select %p260, %s19, 1
        %s262 = scalar_lea.vmem %s4, %s261
        %p263 = pneg %p144
        %p264 = pneg %p141
        %p265 = pneg %p170
        %p266 = pneg %p167
        %s267 = sand.u32 %s157, 1
        %s268 = scalar_lea.sflag [#allocation3], %s267
        %s269 = sand.u32 %s157, 1
        %s270 = smul.addr %s269, 4
        %s271 = scalar_lea.vmem [#allocation2], %s270
        %p272 = scmp.lt.s32.totalorder %s19, 1
        %s273 = scalar_select %p272, %s19, 1
        %s274 = smul.addr %s273, 2
        %s275 = smul.addr %s274, 4
        %s276 = scalar_lea.vmem %s0, %s275
        %p277 = scmp.lt.s32.totalorder %s19, 1
        %s278 = scalar_select %p277, %s19, 1
        %s279 = smul.addr %s278, 2
        %s280 = smul.addr %s279, 4
        %s281 = scalar_lea.vmem %s1, %s280
        %p282 = scmp.lt.s32.totalorder %s19, 1
        %s283 = scalar_select %p282, %s19, 1
        %s284 = smul.addr %s283, 4
        %s285 = scalar_lea.vmem %s2, %s284
        %p286 = scmp.lt.s32.totalorder %s19, 1
        %s287 = scalar_select %p286, %s19, 1
        %s288 = smul.addr %s287, 2
        %s289 = smul.addr %s288, 4
        %s290 = scalar_lea.vmem %s3, %s289
        %p291 = scmp.lt.s32.totalorder %s19, 1
        %s292 = scalar_select %p291, %s19, 1
        %s293 = scalar_lea.vmem %s4, %s292
        %v295 = vld [vmem:[%s276] sm:$0xf]
        %v296 = vld [vmem:[%s276 + $0x4] sm:$0xf]
        %v297 = vld [vmem:[%s281] sm:$0xf]
        %v298 = vld [vmem:[%s281 + $0x4] sm:$0xf]
        %v301 = vunpack.c.l.b16 %v295
        %v302 = vunpack.c.l.b16 %v296
        %v303 = vpack.c.b16 %v302, %v301
        %v306 = vunpack.c.l.b16 %v297
        %v307 = vunpack.c.l.b16 %v298
        %v308 = vpack.c.b16 %v307, %v306
        %vm310 = vcmask 130048
        %v312 = vsel %vm310, %v303, 0
        %314 = vmatprep.subr.bf16.mxu0 0
        %315 = vmatpush1.bf16.msra.mxu0 0
        %316 = vmatprep.subr.bf16.mxu0 0
        %317 = vmatpush1.bf16.msra.mxu0 0
        %318 = vmatprep.subr.bf16.mxu0 0
        %319 = vmatpush1.bf16.msra.mxu0 0
        %320 = vmatprep.subr.bf16.mxu0 0
        %321 = vmatpush1.bf16.msra.mxu0 0
        %322 = vmatprep.subr.bf16.mxu0 0
        %323 = vmatpush1.bf16.msra.mxu0 0
        %324 = vmatprep.subr.bf16.mxu0 0
        %325 = vmatpush1.bf16.msra.mxu0 0
        %326 = vmatprep.subr.bf16.mxu0 0
        %327 = vmatpush1.bf16.msra.mxu0 0
        %328 = vmatprep.subr.bf16.mxu0 0
        %329 = vmatpush1.bf16.msra.mxu0 %v308
        %330 = vmatprep.subr.bf16.mxu0 0
        %331 = vmatpush2.bf16.msra.mxu0 0
        %332 = vmatprep.subr.bf16.mxu0 0
        %333 = vmatpush2.bf16.msra.mxu0 0
        %334 = vmatprep.subr.bf16.mxu0 0
        %335 = vmatpush2.bf16.msra.mxu0 0
        %336 = vmatprep.subr.bf16.mxu0 0
        %337 = vmatpush2.bf16.msra.mxu0 0
        %338 = vmatprep.subr.bf16.mxu0 0
        %339 = vmatpush2.bf16.msra.mxu0 0
        %340 = vmatprep.subr.bf16.mxu0 0
        %341 = vmatpush2.bf16.msra.mxu0 0
        %342 = vmatprep.subr.bf16.mxu0 0
        %343 = vmatpush2.bf16.msra.mxu0 0
        %344 = vmatprep.subr.bf16.mxu0 0
        %345 = vmatpush2.bf16.msra.mxu0 0
        %346 = vmatprep.mubr.bf16.mxu0 0
        %347 = vmatmul.mubr.bf16.gmra.mxu0 %v312
        %v348 = vpop.f32.mrf.mxu0
        %v349 = vadd.f32 0.0, %v348
        %v350 = vpop.f32.mrf.mxu0
        %v351 = vpop.f32.mrf.mxu0
        %v352 = vadd.f32 0.0, %v351
        %v353 = vpop.f32.mrf.mxu0
        %354 = vdwg.mxu0
        %v355 = vsel %vm310, %v349, -inf
        %356 = vmax.xlane.f32.xlu0 %v355
        %v357 = vpop.xlane.xlu0 %356
        %v358 = vsel %vm310, %v352, -inf
        %359 = vmax.xlane.f32.xlu0 %v358
        %v360 = vpop.xlane.xlu0 %359
        %v361 = vsub.f32 %v349, %v357
        %v362 = vsub.f32 %v352, %v360
        %v363 = vmul.f32 %v361, 1.442695
        %v364 = vpow.pop %v363
        %v365 = vmul.f32 %v362, 1.442695
        %v366 = vpow.pop %v365
        %v367 = vpack.c.bf16 %v366, %v364
        %v368 = vld [vmem:[%s290] sm:$0xf]
        %v369 = vld [vmem:[%s290 + $0x4] sm:$0xf]
        %v372 = vunpack.c.l.b16 %v368
        %v373 = vunpack.c.l.b16 %v369
        %v374 = vpack.c.b16 %v373, %v372
        %v377 = vsel %vm310, %v367, 0
        %379 = vmatprep.subr.bf16.mxu0 0
        %380 = vmatpush1.bf16.msra.mxu0 0
        %381 = vmatprep.subr.bf16.mxu0 0
        %382 = vmatpush1.bf16.msra.mxu0 0
        %383 = vmatprep.subr.bf16.mxu0 0
        %384 = vmatpush1.bf16.msra.mxu0 0
        %385 = vmatprep.subr.bf16.mxu0 0
        %386 = vmatpush1.bf16.msra.mxu0 0
        %387 = vmatprep.subr.bf16.mxu0 0
        %388 = vmatpush1.bf16.msra.mxu0 0
        %389 = vmatprep.subr.bf16.mxu0 0
        %390 = vmatpush1.bf16.msra.mxu0 0
        %391 = vmatprep.subr.bf16.mxu0 0
        %392 = vmatpush1.bf16.msra.mxu0 0
        %393 = vmatprep.subr.bf16.mxu0 0
        %394 = vmatpush1.bf16.msra.mxu0 %v374
        %395 = vmatprep.subr.bf16.mxu0 0
        %396 = vmatpush2.bf16.msra.mxu0 0
        %397 = vmatprep.subr.bf16.mxu0 0
        %398 = vmatpush2.bf16.msra.mxu0 0
        %399 = vmatprep.subr.bf16.mxu0 0
        %400 = vmatpush2.bf16.msra.mxu0 0
        %401 = vmatprep.subr.bf16.mxu0 0
        %402 = vmatpush2.bf16.msra.mxu0 0
        %403 = vmatprep.subr.bf16.mxu0 0
        %404 = vmatpush2.bf16.msra.mxu0 0
        %405 = vmatprep.subr.bf16.mxu0 0
        %406 = vmatpush2.bf16.msra.mxu0 0
        %407 = vmatprep.subr.bf16.mxu0 0
        %408 = vmatpush2.bf16.msra.mxu0 0
        %409 = vmatprep.subr.bf16.mxu0 0
        %410 = vmatpush2.bf16.msra.mxu0 0
        %411 = vmatprep.mubr.bf16.mxu0 0
        %412 = vmatmul.mubr.bf16.gmra.mxu0 %v377
        %v413 = vpop.f32.mrf.mxu0
        %v414 = vadd.f32 0.0, %v413
        %v415 = vpop.f32.mrf.mxu0
        %v416 = vpop.f32.mrf.mxu0
        %v417 = vadd.f32 0.0, %v416
        %v418 = vpop.f32.mrf.mxu0
        %419 = vdwg.mxu0
        %v420 = vrcp.pop %v414
        %v421 = vrcp.pop %v417
        %423 = vset.pattern.permute.xlu0 3
        %424 = vperm.xlu0 %423, %v420
        %v425 = vpop.permute.xlu0 %424
        %428 = vset.pattern.permute.xlu0 3
        %429 = vperm.xlu0 %428, %v421
        %v430 = vpop.permute.xlu0 %429
        %v432 = vmul.f32 %v414, %v425
        %v433 = vmul.f32 %v417, %v430
        %vm434 = vcmask 23552
        %v435 = vsel %vm434, %v432, 0.0
        %v436 = vsel %vm434, %v433, 0.0
        %v437 = vadd.f32 %v435, %v436
        %v438 = vrot.slane %v437, 4
        %v439 = vadd.f32 %v437, %v438
        %v440 = vrot.slane %v439, 2
        %v441 = vadd.f32 %v439, %v440
        %v442 = vrot.slane %v441, 1
        %v443 = vadd.f32 %v441, %v442
        %v444 = vmul.f32 %v443, 0.0625
        %v445 = vsub.f32 %v432, %v444
        %v446 = vsub.f32 %v433, %v444
        %v447 = vld [vmem:[%s285] sm:$0x7]
        %vm448 = vcmask 124928
        %v449 = vsel %vm448, %v447, 0.0
        %450 = vadd.xlane.f32.xlu0 %v449
        %v451 = vpop.xlane.xlu0 %450
        %v452 = vmul.f32 %v451, 0.0625
        %v453 = vsub.f32 %v447, %v452
        %v454 = vld [vmem:[%s293] sm:$0x1]
        %v456 = vlaneseq
        %v457 = vshrl.u32 %v456, 7
        %v458 = vsub.s32 0, %v457
        %v459 = vrot.slane %v454, %v458
        %v461 = vmul.f32 %v459, %v453
        %v463 = vsel %vm310, %v461, 0
        %465 = vmatprep.subr.mxu0 0.0
        %466 = vmatpush1.msra.mxu0 0.0
        %467 = vmatprep.subr.mxu0 0.0
        %468 = vmatpush1.msra.mxu0 0.0
        %469 = vmatprep.subr.mxu0 0.0
        %470 = vmatpush1.msra.mxu0 0.0
        %471 = vmatprep.subr.mxu0 0.0
        %472 = vmatpush1.msra.mxu0 0.0
        %473 = vmatprep.subr.mxu0 0.0
        %474 = vmatpush1.msra.mxu0 0.0
        %475 = vmatprep.subr.mxu0 0.0
        %476 = vmatpush1.msra.mxu0 0.0
        %477 = vmatprep.subr.mxu0 0.0
        %478 = vmatpush1.msra.mxu0 0.0
        %479 = vmatprep.subr.mxu0 0.0
        %480 = vmatpush1.msra.mxu0 0.0
        %481 = vmatprep.subr.mxu0 0.0
        %482 = vmatpush1.msra.mxu0 0.0
        %483 = vmatprep.subr.mxu0 0.0
        %484 = vmatpush1.msra.mxu0 0.0
        %485 = vmatprep.subr.mxu0 0.0
        %486 = vmatpush1.msra.mxu0 0.0
        %487 = vmatprep.subr.mxu0 0.0
        %488 = vmatpush1.msra.mxu0 0.0
        %489 = vmatprep.subr.mxu0 0.0
        %490 = vmatpush1.msra.mxu0 0.0
        %491 = vmatprep.subr.mxu0 0.0
        %492 = vmatpush1.msra.mxu0 0.0
        %493 = vmatprep.subr.mxu0 0.0
        %494 = vmatpush1.msra.mxu0 %v446
        %495 = vmatprep.subr.mxu0 0.0
        %496 = vmatpush1.msra.mxu0 %v445
        %497 = vmatprep.subr.mxu0 0.0
        %498 = vmatpush2.msra.mxu0 0.0
        %499 = vmatprep.subr.mxu0 0.0
        %500 = vmatpush2.msra.mxu0 0.0
        %501 = vmatprep.subr.mxu0 0.0
        %502 = vmatpush2.msra.mxu0 0.0
        %503 = vmatprep.subr.mxu0 0.0
        %504 = vmatpush2.msra.mxu0 0.0
        %505 = vmatprep.subr.mxu0 0.0
        %506 = vmatpush2.msra.mxu0 0.0
        %507 = vmatprep.subr.mxu0 0.0
        %508 = vmatpush2.msra.mxu0 0.0
        %509 = vmatprep.subr.mxu0 0.0
        %510 = vmatpush2.msra.mxu0 0.0
        %511 = vmatprep.subr.mxu0 0.0
        %512 = vmatpush2.msra.mxu0 0.0
        %513 = vmatprep.subr.mxu0 0.0
        %514 = vmatpush2.msra.mxu0 0.0
        %515 = vmatprep.subr.mxu0 0.0
        %516 = vmatpush2.msra.mxu0 0.0
        %517 = vmatprep.subr.mxu0 0.0
        %518 = vmatpush2.msra.mxu0 0.0
        %519 = vmatprep.subr.mxu0 0.0
        %520 = vmatpush2.msra.mxu0 0.0
        %521 = vmatprep.subr.mxu0 0.0
        %522 = vmatpush2.msra.mxu0 0.0
        %523 = vmatprep.subr.mxu0 0.0
        %524 = vmatpush2.msra.mxu0 0.0
        %525 = vmatprep.subr.mxu0 0.0
        %526 = vmatpush2.msra.mxu0 0.0
        %527 = vmatprep.subr.mxu0 0.0
        %528 = vmatpush2.msra.mxu0 0.0
        %529 = vmatprep.mubr.f32.mxu0 0.0
        %530 = vmatmul.mubr.f32.gmra.mxu0 %v463
        %v531 = vpop.f32.mrf.mxu0
        %v532 = vadd.f32 0.0, %v531
        %v533 = vpop.f32.mrf.mxu0
        %534 = vdwg.mxu0
        %vm535 = vcmask 27648
        %536 = vst.msk [vmem:[%s271] sm:$0xf] %vm535, 0.0
        %vm537 = vcmask 18432
        %538 = vst.msk [vmem:[%s271] sm:$0x7] %vm537, %v532
        %vm539 = vcmask 16384
        %540 = vst.msk [vmem:[%s271 + $0x3] sm:$0x1] %vm539, %v444
        %s541 = sand.u32 %s157, 1
        %s542 = scalar_lea.sflag [#allocation3], %s541
        %s543 = sand.u32 %s157, 1
        %s544 = smul.addr %s543, 4
        %s545 = scalar_lea.vmem [#allocation2], %s544
        // Predicated region
        $region41: #{tpu_custom_call.1} parent=39 // pred_check
          %p546 = pneg %p167
        $region42: #{tpu_custom_call.1} parent=39 // pred_check_branch
          %548 = sbr.rel (%p546) target = $region44
        $region43: #{tpu_custom_call.1} parent=39 // pred_region
          %s550 = ssub.s32 64, 64
          %551 = vsyncadd %s542, %s550
          %s552 = smul.addr %s19, 64
          %s553 = scalar_lea.hbm %s5, %s552
          %s555 = sshll.u32 %s545, 4
          %s556 = int_to_ptr.vmem [resolvable:$true] %s555
          %558 = dma.vmem_to_hbm [thread:$0]  %s556, 64, %s553, %s542
        $region44: #{tpu_custom_call.1} parent=39 // pred_fallthru
          _
      $region40: #{tpu_custom_call.1} parent=5 // pred_fallthru
        _
      %p559 = scmp.le.s32.totalorder 2, %s14
      // Predicated region
      $region45: #{tpu_custom_call.1} parent=5 // pred_check
        %p560 = pneg %p559
      $region46: #{tpu_custom_call.1} parent=5 // pred_check_branch
        %562 = sbr.rel (%p560) target = $region48
      $region47: #{tpu_custom_call.1} parent=5 // pred_region
        %s563 = ssub.s32 %s14, 2
        // Predicated region
        $region49: #{tpu_custom_call.1} parent=47 // pred_check
          %p564 = pneg %p173
        $region50: #{tpu_custom_call.1} parent=47 // pred_check_branch
          %566 = sbr.rel (%p564) target = $region52
        $region51: #{tpu_custom_call.1} parent=47 // pred_region
          %s567 = sand.u32 %s158, 1
          %s568 = scalar_lea.sflag [#allocation3], %s567
          %s569 = sand.u32 %s158, 1
          %s570 = smul.addr %s569, 4
          %s571 = scalar_lea.vmem [#allocation2], %s570
          %572 = dma.done %s568, 64
        $region52: #{tpu_custom_call.1} parent=47 // pred_fallthru
          _
      $region48: #{tpu_custom_call.1} parent=5 // pred_fallthru
        _
    $region6: #{tpu_custom_call.1} parent=1 // loop_footer
      %s18 = sadd.s32 1, %s14
    $region7: #{tpu_custom_call.1} parent=1 // loop_footer_branch
      %13 = sbr.rel target = $region3
    $region8: #{tpu_custom_call.1} parent=1 // loop_exit
      _
    %573 = vsyncpa [#allocation3], 1
    %s574 = scalar_lea.sflag [#allocation3], 1
    %575 = vsyncpa %s574, 1

</llo_original>
